<compile_context>
chip_gen: v7x
topology: tpu7x:2x2x1
jax: 0.10.0
libtpu: 0.0.40
codegen_flags: <defaults>
</compile_context>

<pallas_src>
import functools

import jax
import jax.numpy as jnp
from jax.experimental import pallas as pl
from jax.experimental.pallas import tpu as pltpu


_TARGET_BLOCK_BYTES = 16 * 1024 * 1024   # max *input* bytes per row-block


def _vmem_budgets():
    """Generation-aware scoped-VMEM limit and pipeline-footprint budget."""
    cap = None
    try:
        cap = getattr(pltpu.get_tpu_info(), "vmem_capacity_bytes", None)
    except Exception:
        cap = None
    if not cap:
        cap = 64 * 1024 * 1024            # conservative (v7x-class) fallback
    vmem_limit = min(int(cap * 0.75), 100 * 1024 * 1024)
    footprint = min(int(cap * 0.60), 80 * 1024 * 1024)
    return vmem_limit, footprint


def _choose_tile_rows(n_rows, lane_width, x_itemsize, out_itemsize, footprint_budget):
    """Largest legal row tile under:
      (a) the pipelined VMEM footprint budget (double-buffered in/out + temps),
      (b) a bytes-per-block cap on the input DMA,
      (c) a >=4-grid-step preference (v7x megacore sharding + DMA overlap).
    """
    mult = 16 if x_itemsize < 4 else 8    # sublane packing (bf16 vs f32)
    per_row = lane_width * (2 * x_itemsize + 2 * out_itemsize + 2 * 4)
    tile = max(footprint_budget // per_row, 1)
    tile = min(tile, max(_TARGET_BLOCK_BYTES // max(lane_width * x_itemsize, 1), 1))
    tile = max((tile // mult) * mult, mult)
    # Prefer at least 4 grid steps so both v7x TensorCores get work and the
    # pipeline can prefetch i+1 / write back i-1.
    quarter = (n_rows // (4 * mult)) * mult
    if quarter >= mult:
        tile = min(tile, quarter)
    if tile >= n_rows:
        return n_rows                     # one full block; exact dims always legal
    return tile


def _ln_kernel(x_ref, w_ref, b_ref, o_ref, *, eps):
    # x_ref: (tile_rows, D) block; w_ref/b_ref: (1, D) f32, resident.
    x = x_ref[...].astype(jnp.float32)
    mean = jnp.mean(x, axis=-1, keepdims=True)
    xc = x - mean
    var = jnp.mean(xc * xc, axis=-1, keepdims=True)
    y = xc * jax.lax.rsqrt(var + eps)
    o_ref[...] = (y * w_ref[...] + b_ref[...]).astype(o_ref.dtype)


def _ln_folded_kernel(x_ref, w_ref, b_ref, m_ref, o_ref, *, eps, inv_d):
    # Lane-dense path: `fold` logical rows of width D are packed along the
    # 128-lane dim.  m_ref is the (128, 128) block-diagonal ones matrix, so
    # x @ m broadcasts each logical-row sum across its own D-lane segment.
    # The matmuls run on the MXU and are hidden under the HBM-bound DMA.
    x = x_ref[...].astype(jnp.float32)
    m = m_ref[...]
    mean = jnp.dot(x, m, preferred_element_type=jnp.float32) * inv_d
    xc = x - mean
    var = jnp.dot(xc * xc, m, preferred_element_type=jnp.float32) * inv_d
    y = xc * jax.lax.rsqrt(var + eps)
    o_ref[...] = (y * w_ref[...] + b_ref[...]).astype(o_ref.dtype)


def layer_norm(x, weight, bias, *, eps=1e-5, tile_rows=None):
    """LayerNorm over the last axis of x (matches F.layer_norm semantics)."""
    orig_shape = x.shape
    d = orig_shape[-1]
    x2 = x.reshape(-1, d)
    n_rows = x2.shape[0]
    out_dtype = x.dtype
    x_isz = jnp.dtype(x.dtype).itemsize
    o_isz = jnp.dtype(out_dtype).itemsize
    vmem_limit, footprint = _vmem_budgets()

    w32 = weight.astype(jnp.float32).reshape(1, d)
    b32 = bias.astype(jnp.float32).reshape(1, d)

    fold = 128 // d if (d < 128 and 128 % d == 0) else 1
    # TODO(synk): lcm-based lane folding for small D that does not divide 128.

    if fold > 1:
        # ---- lane-dense path: pack `fold` rows into 128 lanes --------------
        dd = fold * d                                   # == 128
        pad = (-n_rows) % fold
        if pad:
            x2 = jnp.pad(x2, ((0, pad), (0, 0)))        # few rows at most
        nrp = n_rows + pad
        nrf = nrp // fold
        xf = x2.reshape(nrf, dd)
        wf = jnp.tile(w32, (1, fold))
        bf = jnp.tile(b32, (1, fold))
        seg = jnp.arange(dd, dtype=jnp.int32) // d
        mseg = (seg[:, None] == seg[None, :]).astype(jnp.float32)

        tr = tile_rows if tile_rows is not None else _choose_tile_rows(
            nrf, dd, x_isz, o_isz, footprint)
        grid = (pl.cdiv(nrf, tr),)
        cost = pl.CostEstimate(
            flops=int(4 * nrf * dd * dd + 8 * nrf * dd),
            transcendentals=int(nrf * dd),
            bytes_accessed=int(nrf * dd * (x_isz + o_isz) + (2 * dd + dd * dd) * 4),
        )
        out = pl.pallas_call(
            functools.partial(_ln_folded_kernel, eps=eps, inv_d=1.0 / d),
            out_shape=jax.ShapeDtypeStruct((nrf, dd), out_dtype),
            grid_spec=pltpu.PrefetchScalarGridSpec(
                num_scalar_prefetch=0,
                grid=grid,
                in_specs=[
                    pl.BlockSpec((tr, dd), lambda i: (i, 0)),
                    pl.BlockSpec((1, dd), lambda i: (0, 0)),
                    pl.BlockSpec((1, dd), lambda i: (0, 0)),
                    pl.BlockSpec((dd, dd), lambda i: (0, 0)),
                ],
                out_specs=pl.BlockSpec((tr, dd), lambda i: (i, 0)),
            ),
            compiler_params=pltpu.CompilerParams(
                dimension_semantics=("parallel",),
                vmem_limit_bytes=vmem_limit,
            ),
            cost_estimate=cost,
        )(xf, wf, bf, mseg)
        out = out.reshape(nrp, d)[:n_rows]
        return out.reshape(orig_shape)

    # ---- plain path (D is already lane-dense or >= 128) ---------------------
    tr = tile_rows if tile_rows is not None else _choose_tile_rows(
        n_rows, d, x_isz, o_isz, footprint)
    grid = (pl.cdiv(n_rows, tr),)
    cost = pl.CostEstimate(
        flops=int(8 * n_rows * d),
        transcendentals=int(n_rows),
        bytes_accessed=int(n_rows * d * (x_isz + o_isz) + 2 * 4 * d),
    )
    out = pl.pallas_call(
        functools.partial(_ln_kernel, eps=eps),
        out_shape=jax.ShapeDtypeStruct((n_rows, d), out_dtype),
        grid_spec=pltpu.PrefetchScalarGridSpec(
            num_scalar_prefetch=0,
            grid=grid,
            in_specs=[
                pl.BlockSpec((tr, d), lambda i: (i, 0)),
                pl.BlockSpec((1, d), lambda i: (0, 0)),
                pl.BlockSpec((1, d), lambda i: (0, 0)),
            ],
            out_specs=pl.BlockSpec((tr, d), lambda i: (i, 0)),
        ),
        compiler_params=pltpu.CompilerParams(
            dimension_semantics=("parallel",),
            vmem_limit_bytes=vmem_limit,
        ),
        cost_estimate=cost,
    )(x2, w32, b32)
    return out.reshape(orig_shape)


class LayerNormPallas:
    """Mirror of the PyTorch LayerNorm module (bias optional)."""

    def __init__(self, normalized_shape: int, eps=1e-5, bias=True):
        self.eps = eps
        # torch init: weight = ones; bias param (or zero buffer when bias=False)
        # — a zero buffer is numerically identical to "no bias".
        self.weight = jnp.ones((normalized_shape,), jnp.float32)
        self.bias = jnp.zeros((normalized_shape,), jnp.float32)
        self.normalized_shape = (normalized_shape,)

    def __call__(self, x):
        return layer_norm(x, self.weight, self.bias, eps=self.eps)


def _ref_layer_norm(x, w, b, eps):
    mean = jnp.mean(x, axis=-1, keepdims=True)
    var = jnp.mean((x - mean) ** 2, axis=-1, keepdims=True)
    return (x - mean) / jnp.sqrt(var + eps) * w + b


if __name__ == "__main__":
    key = jax.random.PRNGKey(0)
    k1, k2, k3, k4 = jax.random.split(key, 4)

    # Demo shape implied by the module: (batch=2, seq=8, hidden=32).
    batch, seq, hidden = 2, 8, 32
    x = jax.random.normal(k1, (batch, seq, hidden), dtype=jnp.float32)
    ln = LayerNormPallas(hidden, eps=1e-5, bias=True)
    # Non-trivial affine params so the weight/bias path is actually checked.
    ln.weight = 1.0 + 0.1 * jax.random.normal(k2, (hidden,), dtype=jnp.float32)
    ln.bias = 0.1 * jax.random.normal(k3, (hidden,), dtype=jnp.float32)
    y = jax.block_until_ready(ln(x))
    ref = _ref_layer_norm(x, ln.weight, ln.bias, ln.eps)
    assert jnp.allclose(y, ref, atol=1e-4, rtol=1e-4), "folded-path mismatch"

    # Also exercise the plain (already lane-dense) path, D multiple of 128.
    hidden2 = 256
    x2 = jax.random.normal(k4, (batch, seq, hidden2), dtype=jnp.float32)
    ln2 = LayerNormPallas(hidden2, eps=1e-5, bias=False)
    y2 = jax.block_until_ready(ln2(x2))
    ref2 = _ref_layer_norm(x2, ln2.weight, ln2.bias, ln2.eps)
    assert jnp.allclose(y2, ref2, atol=1e-4, rtol=1e-4), "plain-path mismatch"

    print("KERNEL_OK")
</pallas_src>

<mosaic_0001>
module attributes {stable_mosaic.version = 11 : i64} {
  func.func @_ln_folded_kernel(%arg0: i32, %arg1: memref<4x128xf32, #tpu.memory_space<vmem>>, %arg2: memref<1x128xf32, #tpu.memory_space<vmem>>, %arg3: memref<1x128xf32, #tpu.memory_space<vmem>>, %arg4: memref<128x128xf32, #tpu.memory_space<vmem>>, %arg5: memref<4x128xf32, #tpu.memory_space<vmem>>) attributes {dimension_semantics = [#tpu.dimension_semantics<parallel>], iteration_bounds = array<i64: 1>, scalar_prefetch = 0 : i64, scratch_operands = 0 : i64, tpu.core_type = #tpu.core_type<tc>, window_params = [{transform_indices = @transform_0, window_bounds = array<i64: 4, 128>}, {pipeline_mode = #tpu.pipeline_mode<synchronous>, transform_indices = @transform_1, window_bounds = array<i64: 1, 128>}, {pipeline_mode = #tpu.pipeline_mode<synchronous>, transform_indices = @transform_2, window_bounds = array<i64: 1, 128>}, {pipeline_mode = #tpu.pipeline_mode<synchronous>, transform_indices = @transform_3, window_bounds = array<i64: 128, 128>}, {transform_indices = @transform_4, window_bounds = array<i64: 4, 128>}]} {
    %c0 = arith.constant 0 : index
    %c0_0 = arith.constant 0 : index
    %0 = vector.load %arg1[%c0, %c0_0] : memref<4x128xf32, #tpu.memory_space<vmem>>, vector<4x128xf32>
    %c0_1 = arith.constant 0 : index
    %c0_2 = arith.constant 0 : index
    %1 = vector.load %arg4[%c0_1, %c0_2] : memref<128x128xf32, #tpu.memory_space<vmem>>, vector<128x128xf32>
    %cst = arith.constant dense<0.000000e+00> : vector<4x128xf32>
    %2 = tpu.matmul %0, %1, %cst {dimension_numbers = #tpu.dot_dimension_numbers<[1], [0], [0], [1], [0, 0, 1, 1], [], []>} : vector<4x128xf32>, vector<128x128xf32>, vector<4x128xf32> -> vector<4x128xf32>
    %cst_3 = arith.constant 3.125000e-02 : f32
    %3 = vector.broadcast %cst_3 : f32 to vector<4x128xf32>
    %4 = arith.mulf %2, %3 : vector<4x128xf32>
    %5 = arith.subf %0, %4 : vector<4x128xf32>
    %6 = arith.mulf %5, %5 : vector<4x128xf32>
    %cst_4 = arith.constant dense<0.000000e+00> : vector<4x128xf32>
    %7 = tpu.matmul %6, %1, %cst_4 {dimension_numbers = #tpu.dot_dimension_numbers<[1], [0], [0], [1], [0, 0, 1, 1], [], []>} : vector<4x128xf32>, vector<128x128xf32>, vector<4x128xf32> -> vector<4x128xf32>
    %cst_5 = arith.constant 3.125000e-02 : f32
    %8 = vector.broadcast %cst_5 : f32 to vector<4x128xf32>
    %9 = arith.mulf %7, %8 : vector<4x128xf32>
    %cst_6 = arith.constant 9.99999974E-6 : f32
    %10 = vector.broadcast %cst_6 : f32 to vector<4x128xf32>
    %11 = arith.addf %9, %10 : vector<4x128xf32>
    %12 = math.rsqrt %11 : vector<4x128xf32>
    %13 = arith.mulf %5, %12 : vector<4x128xf32>
    %c0_7 = arith.constant 0 : index
    %c0_8 = arith.constant 0 : index
    %14 = vector.load %arg2[%c0_7, %c0_8] : memref<1x128xf32, #tpu.memory_space<vmem>>, vector<1x128xf32>
    %15 = vector.broadcast %14 : vector<1x128xf32> to vector<4x128xf32>
    %16 = arith.mulf %13, %15 : vector<4x128xf32>
    %c0_9 = arith.constant 0 : index
    %c0_10 = arith.constant 0 : index
    %17 = vector.load %arg3[%c0_9, %c0_10] : memref<1x128xf32, #tpu.memory_space<vmem>>, vector<1x128xf32>
    %18 = vector.broadcast %17 : vector<1x128xf32> to vector<4x128xf32>
    %19 = arith.addf %16, %18 : vector<4x128xf32>
    %c0_11 = arith.constant 0 : index
    %c0_12 = arith.constant 0 : index
    %20 = vector.load %arg5[%c0_11, %c0_12] : memref<4x128xf32, #tpu.memory_space<vmem>>, vector<4x128xf32>
    tpu.vector_store %arg5[%c0_11, %c0_12], %19 {strides = array<i32>} : memref<4x128xf32, #tpu.memory_space<vmem>>, vector<4x128xf32>,
    return
  }
  func.func @transform_0(%arg0: i32) -> (i32, i32) {
    %c0_i32 = arith.constant 0 : i32
    %c0_i32_0 = arith.constant 0 : i32
    return %arg0, %c0_i32 : i32, i32
  }
  func.func @transform_1(%arg0: i32) -> (i32, i32) {
    %c0_i32 = arith.constant 0 : i32
    %c0_i32_0 = arith.constant 0 : i32
    %c0_i32_1 = arith.constant 0 : i32
    return %c0_i32, %c0_i32_0 : i32, i32
  }
  func.func @transform_2(%arg0: i32) -> (i32, i32) {
    %c0_i32 = arith.constant 0 : i32
    %c0_i32_0 = arith.constant 0 : i32
    %c0_i32_1 = arith.constant 0 : i32
    return %c0_i32, %c0_i32_0 : i32, i32
  }
  func.func @transform_3(%arg0: i32) -> (i32, i32) {
    %c0_i32 = arith.constant 0 : i32
    %c0_i32_0 = arith.constant 0 : i32
    %c0_i32_1 = arith.constant 0 : i32
    return %c0_i32, %c0_i32_0 : i32, i32
  }
  func.func @transform_4(%arg0: i32) -> (i32, i32) {
    %c0_i32 = arith.constant 0 : i32
    %c0_i32_0 = arith.constant 0 : i32
    return %arg0, %c0_i32 : i32, i32
  }
}

</mosaic_0001>

<llo_original>
// kernel: tpu_custom_call.1
$region0: #{tpu_custom_call.1}
  #allocation0 [shape = 'u32[]', space=smem, size = 0x4, offset = 0x4, fixed_abs, tag = 'smem constant byte address 0x4 - core index']
  #allocation1 [shape = 'u32[144,128]{1,0:T(1,128)}', space=vmem, size = 0x12000, scoped, tag = 'internal scratch']
  %s0 = inlined_call_operand.hbm [shape: f32[4,128], index: 0, kind: input, shape index: {}]
  %s1 = inlined_call_operand.vmem [shape: f32[1,128], index: 1, kind: input, shape index: {}]
  %s2 = inlined_call_operand.vmem [shape: f32[1,128], index: 2, kind: input, shape index: {}]
  %s3 = inlined_call_operand.hbm [shape: f32[128,128], index: 3, kind: input, shape index: {}]
  %s4 = inlined_call_operand.hbm [shape: f32[4,128], index: 4, kind: output, shape index: {}]
  %s5 = sld [smem:[#allocation0]]
  $region34: #{tpu_custom_call.1} parent=0
    _
  %s7 = ssub.s32 1, %s5
  %s8 = scalar_select 0, %s7, %s5
  $region1: #{tpu_custom_call.1} parent=0
    #allocation2 [shape = 'u8[2048]{0}', space=vmem, size = 0x800, scoped, tag = 'input window, operand 0, single buffered']
    #allocation3 [shape = 's32[1]{0}', space=sflag, size = 0x4, scoped, tag = 'scoped memory for tpu_custom_call.1']
    #allocation4 [shape = 's32[1]{0}', space=sflag, size = 0x4, scoped, tag = 'scoped memory for tpu_custom_call.1']
    #allocation5 [shape = 'u8[65536]{0}', space=vmem, size = 0x10000, scoped, tag = 'input window, operand 3, single buffered']
    #allocation6 [shape = 's32[1]{0}', space=sflag, size = 0x4, scoped, tag = 'scoped memory for tpu_custom_call.1']
    #allocation7 [shape = 'u8[2048]{0}', space=vmem, size = 0x800, scoped, tag = 'output window, operand 0, single buffered']
    %9 = vsyncpa [#allocation3], 0
    %10 = vsyncpa [#allocation6], 0
    %11 = vsyncpa [#allocation4], 0
    // Predicated region
    $region2: #{tpu_custom_call.1} parent=1 // pred_check
      _
    $region3: #{tpu_custom_call.1} parent=1 // pred_check_branch
      %13 = sbr.rel (0) target = $region5
    $region4: #{tpu_custom_call.1} parent=1 // pred_region
      %s15 = ssub.s32 64, 64
      %16 = vsyncadd [#allocation3], %s15
      %s18 = sshll.u32 [#allocation2], 4
      %s19 = int_to_ptr.vmem [resolvable:$true] %s18
      %21 = dma.hbm_to_vmem [thread:$0]  %s0, 64, %s19, [#allocation3]
    $region5: #{tpu_custom_call.1} parent=1 // pred_fallthru
      _
    // Predicated region
    $region6: #{tpu_custom_call.1} parent=1 // pred_check
      _
    $region7: #{tpu_custom_call.1} parent=1 // pred_check_branch
      %23 = sbr.rel (0) target = $region9
    $region8: #{tpu_custom_call.1} parent=1 // pred_region
      _
    $region9: #{tpu_custom_call.1} parent=1 // pred_fallthru
      _
    // Predicated region
    $region10: #{tpu_custom_call.1} parent=1 // pred_check
      _
    $region11: #{tpu_custom_call.1} parent=1 // pred_check_branch
      %25 = sbr.rel (0) target = $region13
    $region12: #{tpu_custom_call.1} parent=1 // pred_region
      _
    $region13: #{tpu_custom_call.1} parent=1 // pred_fallthru
      _
    // Predicated region
    $region14: #{tpu_custom_call.1} parent=1 // pred_check
      _
    $region15: #{tpu_custom_call.1} parent=1 // pred_check_branch
      %27 = sbr.rel (0) target = $region17
    $region16: #{tpu_custom_call.1} parent=1 // pred_region
      %s29 = ssub.s32 2048, 2048
      %30 = vsyncadd [#allocation6], %s29
      %s31 = sshll.u32 [#allocation5], 4
      %s32 = int_to_ptr.vmem [resolvable:$true] %s31
      %37 = dma.hbm_to_vmem [thread:$0]  %s3, 2048, %s32, [#allocation6], 128, 128, 8
    $region17: #{tpu_custom_call.1} parent=1 // pred_fallthru
      _
    // Predicated region
    $region18: #{tpu_custom_call.1} parent=1 // pred_check
      _
    $region19: #{tpu_custom_call.1} parent=1 // pred_check_branch
      %39 = sbr.rel (0) target = $region21
    $region20: #{tpu_custom_call.1} parent=1 // pred_region
      %40 = dma.done [#allocation3], 64
    $region21: #{tpu_custom_call.1} parent=1 // pred_fallthru
      _
    // Predicated region
    $region22: #{tpu_custom_call.1} parent=1 // pred_check
      _
    $region23: #{tpu_custom_call.1} parent=1 // pred_check_branch
      %42 = sbr.rel (0) target = $region25
    $region24: #{tpu_custom_call.1} parent=1 // pred_region
      %43 = dma.done [#allocation6], 2048
    $region25: #{tpu_custom_call.1} parent=1 // pred_fallthru
      _
    %v44 = vld [vmem:[#allocation2] sm:$0xf]
    %v45 = vld [vmem:[#allocation5] sm:$0xff]
    %v46 = vld [vmem:[#allocation5 + $0x8] sm:$0xff]
    %v47 = vld [vmem:[#allocation5 + $0x10] sm:$0xff]
    %v48 = vld [vmem:[#allocation5 + $0x18] sm:$0xff]
    %v49 = vld [vmem:[#allocation5 + $0x20] sm:$0xff]
    %v50 = vld [vmem:[#allocation5 + $0x28] sm:$0xff]
    %v51 = vld [vmem:[#allocation5 + $0x30] sm:$0xff]
    %v52 = vld [vmem:[#allocation5 + $0x38] sm:$0xff]
    %v53 = vld [vmem:[#allocation5 + $0x40] sm:$0xff]
    %v54 = vld [vmem:[#allocation5 + $0x48] sm:$0xff]
    %v55 = vld [vmem:[#allocation5 + $0x50] sm:$0xff]
    %v56 = vld [vmem:[#allocation5 + $0x58] sm:$0xff]
    %v57 = vld [vmem:[#allocation5 + $0x60] sm:$0xff]
    %v58 = vld [vmem:[#allocation5 + $0x68] sm:$0xff]
    %v59 = vld [vmem:[#allocation5 + $0x70] sm:$0xff]
    %v60 = vld [vmem:[#allocation5 + $0x78] sm:$0xff]
    %61 = vmatprep.subr.mxu0 0.0
    %62 = vmatpush1.msra.mxu0 %v45
    %63 = vmatprep.subr.mxu0 0.0
    %64 = vmatpush1.msra.mxu0 %v46
    %65 = vmatprep.subr.mxu0 0.0
    %66 = vmatpush1.msra.mxu0 %v47
    %67 = vmatprep.subr.mxu0 0.0
    %68 = vmatpush1.msra.mxu0 %v48
    %69 = vmatprep.subr.mxu0 0.0
    %70 = vmatpush1.msra.mxu0 %v49
    %71 = vmatprep.subr.mxu0 0.0
    %72 = vmatpush1.msra.mxu0 %v50
    %73 = vmatprep.subr.mxu0 0.0
    %74 = vmatpush1.msra.mxu0 %v51
    %75 = vmatprep.subr.mxu0 0.0
    %76 = vmatpush1.msra.mxu0 %v52
    %77 = vmatprep.subr.mxu0 0.0
    %78 = vmatpush1.msra.mxu0 %v53
    %79 = vmatprep.subr.mxu0 0.0
    %80 = vmatpush1.msra.mxu0 %v54
    %81 = vmatprep.subr.mxu0 0.0
    %82 = vmatpush1.msra.mxu0 %v55
    %83 = vmatprep.subr.mxu0 0.0
    %84 = vmatpush1.msra.mxu0 %v56
    %85 = vmatprep.subr.mxu0 0.0
    %86 = vmatpush1.msra.mxu0 %v57
    %87 = vmatprep.subr.mxu0 0.0
    %88 = vmatpush1.msra.mxu0 %v58
    %89 = vmatprep.subr.mxu0 0.0
    %90 = vmatpush1.msra.mxu0 %v59
    %91 = vmatprep.subr.mxu0 0.0
    %92 = vmatpush1.msra.mxu0 %v60
    %93 = vmatprep.subr.mxu0 0.0
    %94 = vmatpush1.msra.mxu0 0.0
    %95 = vmatprep.subr.mxu0 0.0
    %96 = vmatpush1.msra.mxu0 0.0
    %97 = vmatprep.subr.mxu0 0.0
    %98 = vmatpush1.msra.mxu0 0.0
    %99 = vmatprep.subr.mxu0 0.0
    %100 = vmatpush1.msra.mxu0 0.0
    %101 = vmatprep.subr.mxu0 0.0
    %102 = vmatpush1.msra.mxu0 0.0
    %103 = vmatprep.subr.mxu0 0.0
    %104 = vmatpush1.msra.mxu0 0.0
    %105 = vmatprep.subr.mxu0 0.0
    %106 = vmatpush1.msra.mxu0 0.0
    %107 = vmatprep.subr.mxu0 0.0
    %108 = vmatpush1.msra.mxu0 0.0
    %109 = vmatprep.subr.mxu0 0.0
    %110 = vmatpush1.msra.mxu0 0.0
    %111 = vmatprep.subr.mxu0 0.0
    %112 = vmatpush1.msra.mxu0 0.0
    %113 = vmatprep.subr.mxu0 0.0
    %114 = vmatpush1.msra.mxu0 0.0
    %115 = vmatprep.subr.mxu0 0.0
    %116 = vmatpush1.msra.mxu0 0.0
    %117 = vmatprep.subr.mxu0 0.0
    %118 = vmatpush1.msra.mxu0 0.0
    %119 = vmatprep.subr.mxu0 0.0
    %120 = vmatpush1.msra.mxu0 0.0
    %121 = vmatprep.subr.mxu0 0.0
    %122 = vmatpush1.msra.mxu0 0.0
    %123 = vmatprep.subr.mxu0 0.0
    %124 = vmatpush1.msra.mxu0 0.0
    %125 = vmatprep.mubr.f32.mxu0 0.0
    %126 = vmatmul.mubr.f32.gmra.mrb[0].mxu0 %v44
    %v127 = vpop.f32.mrb[0].mxu0
    %v128 = vadd.f32 0.0, %v127
    %v129 = vpop.f32.mrb[0].mxu0
    %130 = vdwg.mxu0
    %v131 = vmul.f32 %v128, 0.03125
    %v132 = vsub.f32 %v44, %v131
    %v133 = vmul.f32 %v132, %v132
    %134 = vmatprep.subr.mxu0 0.0
    %135 = vmatpush1.msra.mxu0 %v45
    %136 = vmatprep.subr.mxu0 0.0
    %137 = vmatpush1.msra.mxu0 %v46
    %138 = vmatprep.subr.mxu0 0.0
    %139 = vmatpush1.msra.mxu0 %v47
    %140 = vmatprep.subr.mxu0 0.0
    %141 = vmatpush1.msra.mxu0 %v48
    %142 = vmatprep.subr.mxu0 0.0
    %143 = vmatpush1.msra.mxu0 %v49
    %144 = vmatprep.subr.mxu0 0.0
    %145 = vmatpush1.msra.mxu0 %v50
    %146 = vmatprep.subr.mxu0 0.0
    %147 = vmatpush1.msra.mxu0 %v51
    %148 = vmatprep.subr.mxu0 0.0
    %149 = vmatpush1.msra.mxu0 %v52
    %150 = vmatprep.subr.mxu0 0.0
    %151 = vmatpush1.msra.mxu0 %v53
    %152 = vmatprep.subr.mxu0 0.0
    %153 = vmatpush1.msra.mxu0 %v54
    %154 = vmatprep.subr.mxu0 0.0
    %155 = vmatpush1.msra.mxu0 %v55
    %156 = vmatprep.subr.mxu0 0.0
    %157 = vmatpush1.msra.mxu0 %v56
    %158 = vmatprep.subr.mxu0 0.0
    %159 = vmatpush1.msra.mxu0 %v57
    %160 = vmatprep.subr.mxu0 0.0
    %161 = vmatpush1.msra.mxu0 %v58
    %162 = vmatprep.subr.mxu0 0.0
    %163 = vmatpush1.msra.mxu0 %v59
    %164 = vmatprep.subr.mxu0 0.0
    %165 = vmatpush1.msra.mxu0 %v60
    %166 = vmatprep.subr.mxu0 0.0
    %167 = vmatpush1.msra.mxu0 0.0
    %168 = vmatprep.subr.mxu0 0.0
    %169 = vmatpush1.msra.mxu0 0.0
    %170 = vmatprep.subr.mxu0 0.0
    %171 = vmatpush1.msra.mxu0 0.0
    %172 = vmatprep.subr.mxu0 0.0
    %173 = vmatpush1.msra.mxu0 0.0
    %174 = vmatprep.subr.mxu0 0.0
    %175 = vmatpush1.msra.mxu0 0.0
    %176 = vmatprep.subr.mxu0 0.0
    %177 = vmatpush1.msra.mxu0 0.0
    %178 = vmatprep.subr.mxu0 0.0
    %179 = vmatpush1.msra.mxu0 0.0
    %180 = vmatprep.subr.mxu0 0.0
    %181 = vmatpush1.msra.mxu0 0.0
    %182 = vmatprep.subr.mxu0 0.0
    %183 = vmatpush1.msra.mxu0 0.0
    %184 = vmatprep.subr.mxu0 0.0
    %185 = vmatpush1.msra.mxu0 0.0
    %186 = vmatprep.subr.mxu0 0.0
    %187 = vmatpush1.msra.mxu0 0.0
    %188 = vmatprep.subr.mxu0 0.0
    %189 = vmatpush1.msra.mxu0 0.0
    %190 = vmatprep.subr.mxu0 0.0
    %191 = vmatpush1.msra.mxu0 0.0
    %192 = vmatprep.subr.mxu0 0.0
    %193 = vmatpush1.msra.mxu0 0.0
    %194 = vmatprep.subr.mxu0 0.0
    %195 = vmatpush1.msra.mxu0 0.0
    %196 = vmatprep.subr.mxu0 0.0
    %197 = vmatpush1.msra.mxu0 0.0
    %198 = vmatprep.mubr.f32.mxu0 0.0
    %199 = vmatmul.mubr.f32.gmra.mrb[0].mxu0 %v133
    %v200 = vpop.f32.mrb[0].mxu0
    %v201 = vadd.f32 0.0, %v200
    %v202 = vpop.f32.mrb[0].mxu0
    %203 = vdwg.mxu0
    %v204 = vmul.f32 %v201, 0.03125
    %v205 = vadd.f32 %v204, 1e-05
    %v206 = vrsqrt.pop %v205
    %v207 = vmul.f32 %v132, %v206
    %v208 = vld [vmem:[%s1] sm:$0x1]
    %v210 = vlaneseq
    %v211 = vshrl.u32 %v210, 7
    %v212 = vsub.s32 0, %v211
    %v213 = vrot.slane %v208, %v212
    %v215 = vmul.f32 %v207, %v213
    %v216 = vld [vmem:[%s2] sm:$0x1]
    %v218 = vlaneseq
    %v219 = vshrl.u32 %v218, 7
    %v220 = vsub.s32 0, %v219
    %v221 = vrot.slane %v216, %v220
    %v223 = vadd.f32 %v215, %v221
    %224 = vst [vmem:[#allocation7] sm:$0xf] %v223
    // Predicated region
    $region26: #{tpu_custom_call.1} parent=1 // pred_check
      _
    $region27: #{tpu_custom_call.1} parent=1 // pred_check_branch
      %226 = sbr.rel (0) target = $region29
    $region28: #{tpu_custom_call.1} parent=1 // pred_region
      %s228 = ssub.s32 64, 64
      %229 = vsyncadd [#allocation4], %s228
      %s231 = sshll.u32 [#allocation7], 4
      %s232 = int_to_ptr.vmem [resolvable:$true] %s231
      %234 = dma.vmem_to_hbm [thread:$0]  %s232, 64, %s4, [#allocation4]
    $region29: #{tpu_custom_call.1} parent=1 // pred_fallthru
      _
    // Predicated region
    $region30: #{tpu_custom_call.1} parent=1 // pred_check
      _
    $region31: #{tpu_custom_call.1} parent=1 // pred_check_branch
      %236 = sbr.rel (0) target = $region33
    $region32: #{tpu_custom_call.1} parent=1 // pred_region
      %237 = dma.done [#allocation4], 64
    $region33: #{tpu_custom_call.1} parent=1 // pred_fallthru
      _
    %238 = vsyncpa [#allocation3], 1
    %239 = vsyncpa [#allocation6], 1
    %240 = vsyncpa [#allocation4], 1

</llo_original>
